<compile_context>
chip_gen: v7x
topology: tpu7x:2x2x1
jax: 0.10.0
libtpu: 0.0.40
codegen_flags: <defaults>
</compile_context>

<pallas_src>
import jax
import jax.numpy as jnp
from jax.experimental import pallas as pl
from jax.experimental.pallas import tpu as pltpu


def _round_up(n, m):
    return (n + m - 1) // m * m


def _choose_tile_b(B, requested=2048):
    # Large tiles amortize per-step overhead; small batches don't over-pad.
    return int(max(256, min(requested, _round_up(B, 256))))


# ---------------------------------------------------------------------------
# Pallas kernel: FM_Layer hot path, transposed layout (lanes = batch)
# ---------------------------------------------------------------------------
def fm_kernel(xT_ref, vT_ref, w_ref, v2h_ref, b_ref, out_ref):
    # xT_ref : (Dp, TILE_B) bf16  feature tile, transposed
    # vT_ref : (Dp, Dp)     bf16  transpose(V) / sqrt(2), VMEM-resident
    # w_ref  : (Dp, 1)      f32   linear weights (column)
    # v2h_ref: (Dp, 1)      f32   0.5 * rowsum(V^2), from the bf16-rounded V
    # b_ref  : (1, TILE_B)  f32   bias_u + bias_i + global bias per example
    # out_ref: (1, TILE_B)  f32   lane-dense rating output
    xT_bf = xT_ref[...]
    xT = xT_bf.astype(jnp.float32)

    # s1T[d, b] = (x @ V)[b, d] / sqrt(2) — natural MXU orientation, no transpose.
    s1T = jnp.dot(vT_ref[...], xT_bf, preferred_element_type=jnp.float32)

    # rate[b] = sum_d [ s1T^2 + x*(w - x*v2h) ][d, b] + bias[b]
    # (the 0.5 factors are folded into vT_ref / v2h_ref)
    contribT = s1T * s1T + xT * (w_ref[...] - xT * v2h_ref[...])

    out_ref[...] = jnp.sum(contribT, axis=0, keepdims=True) + b_ref[...]


# ---------------------------------------------------------------------------
# One-time parameter preprocessing (hoisted out of the forward path)
# ---------------------------------------------------------------------------
def prepare_fm_params(V, w):
    D = V.shape[0]
    Dp = max(_round_up(D, 128), 128)
    inv_sqrt2 = 1.0 / (2.0 ** 0.5)
    # transpose + scale + zero-pad (exact: padded rows/lanes contribute 0)
    vT = jnp.zeros((Dp, Dp), jnp.float32).at[:D, :D].set(V.T * inv_sqrt2)
    vT_bf = vT.astype(jnp.bfloat16)
    # 0.5 * rowsum(V^2) computed from the SAME bf16-rounded values the MXU uses,
    # so the two (partially cancelling) second-order terms stay consistent.
    v2h_col = jnp.sum(vT_bf.astype(jnp.float32) ** 2, axis=0).reshape(Dp, 1)
    w_col = jnp.zeros((Dp, 1), jnp.float32).at[:D, 0].set(w.reshape(-1))
    return {"D": D, "Dp": Dp, "vT_bf": vT_bf, "w_col": w_col, "v2h_col": v2h_col}


# ---------------------------------------------------------------------------
# Wrapper: pads/casts the streamed inputs and launches the kernel
# ---------------------------------------------------------------------------
def fm_layer_pallas(xT, fm_prep, bias_vec, *, tile_b=None):
    """xT: (D, B) FM features (transposed), bias_vec: (B,) -> ratings (B,)."""
    D, B = xT.shape
    Dp = fm_prep["Dp"]
    assert D == fm_prep["D"]
    if tile_b is None:
        tile_b = _choose_tile_b(B)
    Bp = max(_round_up(B, tile_b), tile_b)
    num_tiles = Bp // tile_b

    # single fused pad+cast of the streamed feature tile (zero pad is exact)
    xT_bf = jnp.pad(xT.astype(jnp.bfloat16), ((0, Dp - D), (0, Bp - B)))
    bias_row = jnp.pad(bias_vec.astype(jnp.float32).reshape(1, B),
                       ((0, 0), (0, Bp - B)))

    # VMEM budget: streamed tiles (double-buffered) + resident params
    # + kernel-internal f32 temporaries (xT32, s1T, contribT).
    vmem_bytes = (2 * Dp * tile_b * 2        # xT tile bf16, double-buffered
                  + 3 * Dp * tile_b * 4      # xT32 / s1T / contribT f32 temporaries
                  + 2 * Dp * Dp * 2          # resident V^T (bf16), buffered
                  + 2 * 2 * Dp * 4           # w / v2h columns (f32)
                  + 4 * tile_b * 4           # bias + out rows (f32)
                  + (2 << 20))               # slack
    # 32 MiB is within the physical/scoped limits on v5e, v6e and v7x.
    vmem_limit = int(min(32 << 20, max(16 << 20, 2 * vmem_bytes)))

    out = pl.pallas_call(
        fm_kernel,
        out_shape=jax.ShapeDtypeStruct((1, Bp), jnp.float32),
        grid=(num_tiles,),
        in_specs=[
            pl.BlockSpec((Dp, tile_b), lambda i: (0, i)),   # xT streams per tile
            pl.BlockSpec((Dp, Dp), lambda i: (0, 0)),       # V^T stays resident
            pl.BlockSpec((Dp, 1), lambda i: (0, 0)),        # w resident
            pl.BlockSpec((Dp, 1), lambda i: (0, 0)),        # v2h resident
            pl.BlockSpec((1, tile_b), lambda i: (0, i)),    # per-example bias
        ],
        out_specs=pl.BlockSpec((1, tile_b), lambda i: (0, i)),
        compiler_params=pltpu.CompilerParams(
            dimension_semantics=("parallel",),
            vmem_limit_bytes=vmem_limit),
    )(xT_bf, fm_prep["vT_bf"], fm_prep["w_col"], fm_prep["v2h_col"], bias_row)
    return out.reshape(-1)[:B]


# ---------------------------------------------------------------------------
# Deterministic parameter construction (mirrors APM.__init__ shapes)
# ---------------------------------------------------------------------------
def xavier_uniform(key, shape, gain=1.0):
    fan_in, fan_out = shape[-1], shape[-2] if len(shape) > 1 else shape[-1]
    bound = gain * jnp.sqrt(6.0 / (fan_in + fan_out))
    return jax.random.uniform(key, shape, jnp.float32, -bound, bound)


def init_apm_params(key, n_users, n_items, n_words, dim, word_dim):
    assert word_dim == dim, "FM input_dim = 4*dim requires word_dim == dim"
    D = 4 * dim
    ks = jax.random.split(key, 6)
    fm_V = xavier_uniform(ks[3], (D, D), 0.1)
    fm_w = jax.random.uniform(
        ks[4], (D, 1), jnp.float32, -1.0 / jnp.sqrt(D), 1.0 / jnp.sqrt(D))
    return {
        "user_embedding": xavier_uniform(ks[0], (n_users, dim), 0.1),
        "item_embedding": xavier_uniform(ks[1], (n_items, dim), 0.1),
        "word_embedding": xavier_uniform(ks[2], (n_words, word_dim), 0.1),
        "fm_V": fm_V,
        "fm_w": fm_w,
        "fm_bias_u": jnp.zeros((n_users,), jnp.float32),
        "fm_bias_i": jnp.zeros((n_items,), jnp.float32),
        "fm_bias": jnp.ones((1, 1), jnp.float32) * 3.0,
        "fm_prep": prepare_fm_params(fm_V, fm_w),   # hoisted per-call prep
        "n_users": n_users,
    }


# ---------------------------------------------------------------------------
# APM forward (embedding gather / concat in plain JAX, FM hot path in Pallas)
# ---------------------------------------------------------------------------
def apm_forward(params, uid_batch, iid_batch):
    n_users = params["n_users"]
    u_e = params["user_embedding"][uid_batch]                  # (B, dim)
    i_e = params["item_embedding"][iid_batch]                  # (B, dim)
    u_graph_emb = params["word_embedding"][uid_batch]          # (B, dim)
    i_graph_emb = params["word_embedding"][iid_batch + n_users]

    # feature tile built directly in the transposed layout the kernel streams
    xT = jnp.concatenate(
        [u_e.T, u_graph_emb.T, i_e.T, i_graph_emb.T], axis=0)  # (4*dim, B)

    bias_vec = (params["fm_bias_u"][uid_batch]
                + params["fm_bias_i"][iid_batch]
                + params["fm_bias"][0, 0])                      # (B,)

    return fm_layer_pallas(xT, params["fm_prep"], bias_vec)


def apm_forward_reference(params, uid_batch, iid_batch):
    """Pure-jnp f32 reference of the same forward, for a correctness check."""
    n_users = params["n_users"]
    u_e = params["user_embedding"][uid_batch]
    i_e = params["item_embedding"][iid_batch]
    x = jnp.concatenate(
        [u_e, params["word_embedding"][uid_batch],
         i_e, params["word_embedding"][iid_batch + n_users]], axis=-1)
    V = params["fm_V"]
    lin = (x @ params["fm_w"])[:, 0]
    s1 = x @ V
    s2 = (x * x) @ (V * V)
    mlp = 0.5 * jnp.sum(s1 * s1 - s2, axis=-1)
    return (lin + mlp + params["fm_bias_u"][uid_batch]
            + params["fm_bias_i"][iid_batch] + params["fm_bias"][0, 0])


# ---------------------------------------------------------------------------
if __name__ == "__main__":
    key = jax.random.PRNGKey(0)
    k_param, k_uid, k_iid = jax.random.split(key, 3)

    # small config consistent with the module
    n_users, n_items, dim, word_dim = 10, 12, 8, 8
    n_words = n_users + n_items + 6          # must cover iid + n_users lookups
    batch = 4

    params = init_apm_params(k_param, n_users, n_items, n_words, dim, word_dim)

    uid_batch = jax.random.randint(k_uid, (batch,), 0, n_users)
    iid_batch = jax.random.randint(k_iid, (batch,), 0, n_items)

    rate = apm_forward(params, uid_batch, iid_batch)
    rate = jax.block_until_ready(rate)

    rate_ref = apm_forward_reference(params, uid_batch, iid_batch)
    assert rate.shape == (batch,)
    # bf16 MXU inputs with f32 accumulation -> loose but tight-enough tolerance
    assert jnp.allclose(rate, rate_ref, atol=1e-2, rtol=1e-2), (rate, rate_ref)

    print("KERNEL_OK")
</pallas_src>

<mosaic_0001>
module attributes {stable_mosaic.version = 11 : i64} {
  func.func @fm_kernel(%arg0: i32, %arg1: memref<128x256xbf16, #tpu.memory_space<vmem>>, %arg2: memref<128x128xbf16, #tpu.memory_space<vmem>>, %arg3: memref<128x1xf32, #tpu.memory_space<vmem>>, %arg4: memref<128x1xf32, #tpu.memory_space<vmem>>, %arg5: memref<1x256xf32, #tpu.memory_space<vmem>>, %arg6: memref<1x256xf32, #tpu.memory_space<vmem>>) attributes {dimension_semantics = [#tpu.dimension_semantics<parallel>], iteration_bounds = array<i64: 1>, scalar_prefetch = 0 : i64, scratch_operands = 0 : i64, tpu.core_type = #tpu.core_type<tc>, window_params = [{transform_indices = @transform_0, window_bounds = array<i64: 128, 256>}, {pipeline_mode = #tpu.pipeline_mode<synchronous>, transform_indices = @transform_1, window_bounds = array<i64: 128, 128>}, {pipeline_mode = #tpu.pipeline_mode<synchronous>, transform_indices = @transform_2, window_bounds = array<i64: 128, 1>}, {pipeline_mode = #tpu.pipeline_mode<synchronous>, transform_indices = @transform_3, window_bounds = array<i64: 128, 1>}, {transform_indices = @transform_4, window_bounds = array<i64: 1, 256>}, {transform_indices = @transform_5, window_bounds = array<i64: 1, 256>}]} {
    %c0 = arith.constant 0 : index
    %c0_0 = arith.constant 0 : index
    %0 = vector.load %arg1[%c0, %c0_0] : memref<128x256xbf16, #tpu.memory_space<vmem>>, vector<128x256xbf16>
    %1 = arith.extf %0 : vector<128x256xbf16> to vector<128x256xf32>
    %c0_1 = arith.constant 0 : index
    %c0_2 = arith.constant 0 : index
    %2 = vector.load %arg2[%c0_1, %c0_2] : memref<128x128xbf16, #tpu.memory_space<vmem>>, vector<128x128xbf16>
    %cst = arith.constant dense<0.000000e+00> : vector<128x256xf32>
    %3 = tpu.matmul %2, %0, %cst {dimension_numbers = #tpu.dot_dimension_numbers<[1], [0], [0], [1], [0, 0, 1, 1], [], []>} : vector<128x128xbf16>, vector<128x256xbf16>, vector<128x256xf32> -> vector<128x256xf32>
    %4 = arith.mulf %3, %3 : vector<128x256xf32>
    %c0_3 = arith.constant 0 : index
    %c0_4 = arith.constant 0 : index
    %5 = vector.load %arg3[%c0_3, %c0_4] : memref<128x1xf32, #tpu.memory_space<vmem>>, vector<128x1xf32>
    %c0_5 = arith.constant 0 : index
    %c0_6 = arith.constant 0 : index
    %6 = vector.load %arg4[%c0_5, %c0_6] : memref<128x1xf32, #tpu.memory_space<vmem>>, vector<128x1xf32>
    %7 = vector.broadcast %6 : vector<128x1xf32> to vector<128x256xf32>
    %8 = arith.mulf %1, %7 : vector<128x256xf32>
    %9 = vector.broadcast %5 : vector<128x1xf32> to vector<128x256xf32>
    %10 = arith.subf %9, %8 : vector<128x256xf32>
    %11 = arith.mulf %1, %10 : vector<128x256xf32>
    %12 = arith.addf %4, %11 : vector<128x256xf32>
    %cst_7 = arith.constant dense<0.000000e+00> : vector<256xf32>
    %13 = vector.multi_reduction <add>, %12, %cst_7 [0] : vector<128x256xf32> to vector<256xf32>
    %14 = vector.shape_cast %13 : vector<256xf32> to vector<1x256xf32>
    %c0_8 = arith.constant 0 : index
    %c0_9 = arith.constant 0 : index
    %15 = vector.load %arg5[%c0_8, %c0_9] : memref<1x256xf32, #tpu.memory_space<vmem>>, vector<1x256xf32>
    %16 = arith.addf %14, %15 : vector<1x256xf32>
    %c0_10 = arith.constant 0 : index
    %c0_11 = arith.constant 0 : index
    %17 = vector.load %arg6[%c0_10, %c0_11] : memref<1x256xf32, #tpu.memory_space<vmem>>, vector<1x256xf32>
    tpu.vector_store %arg6[%c0_10, %c0_11], %16 {strides = array<i32>} : memref<1x256xf32, #tpu.memory_space<vmem>>, vector<1x256xf32>,
    return
  }
  func.func @transform_0(%arg0: i32) -> (i32, i32) {
    %c0_i32 = arith.constant 0 : i32
    %c0_i32_0 = arith.constant 0 : i32
    return %c0_i32, %arg0 : i32, i32
  }
  func.func @transform_1(%arg0: i32) -> (i32, i32) {
    %c0_i32 = arith.constant 0 : i32
    %c0_i32_0 = arith.constant 0 : i32
    %c0_i32_1 = arith.constant 0 : i32
    return %c0_i32, %c0_i32_0 : i32, i32
  }
  func.func @transform_2(%arg0: i32) -> (i32, i32) {
    %c0_i32 = arith.constant 0 : i32
    %c0_i32_0 = arith.constant 0 : i32
    %c0_i32_1 = arith.constant 0 : i32
    return %c0_i32, %c0_i32_0 : i32, i32
  }
  func.func @transform_3(%arg0: i32) -> (i32, i32) {
    %c0_i32 = arith.constant 0 : i32
    %c0_i32_0 = arith.constant 0 : i32
    %c0_i32_1 = arith.constant 0 : i32
    return %c0_i32, %c0_i32_0 : i32, i32
  }
  func.func @transform_4(%arg0: i32) -> (i32, i32) {
    %c0_i32 = arith.constant 0 : i32
    %c0_i32_0 = arith.constant 0 : i32
    return %c0_i32, %arg0 : i32, i32
  }
  func.func @transform_5(%arg0: i32) -> (i32, i32) {
    %c0_i32 = arith.constant 0 : i32
    %c0_i32_0 = arith.constant 0 : i32
    return %c0_i32, %arg0 : i32, i32
  }
}

</mosaic_0001>

<llo_original>
// kernel: tpu_custom_call.1
$region0: #{tpu_custom_call.1}
  #allocation0 [shape = 'u32[]', space=smem, size = 0x4, offset = 0x4, fixed_abs, tag = 'smem constant byte address 0x4 - core index']
  #allocation1 [shape = 'u32[144,128]{1,0:T(1,128)}', space=vmem, size = 0x12000, scoped, tag = 'internal scratch']
  %s0 = inlined_call_operand.vmem [shape: bf16[128,256], index: 0, kind: input, shape index: {}]
  %s1 = inlined_call_operand.vmem [shape: bf16[128,128], index: 1, kind: input, shape index: {}]
  %s2 = inlined_call_operand.vmem [shape: f32[128,1], index: 2, kind: input, shape index: {}]
  %s3 = inlined_call_operand.vmem [shape: f32[128,1], index: 3, kind: input, shape index: {}]
  %s4 = inlined_call_operand.vmem [shape: f32[1,256], index: 4, kind: input, shape index: {}]
  %s5 = inlined_call_operand.hbm [shape: f32[1,256], index: 5, kind: output, shape index: {}]
  %s6 = sld [smem:[#allocation0]]
  $region30: #{tpu_custom_call.1} parent=0
    _
  %s8 = ssub.s32 1, %s6
  %s9 = scalar_select 0, %s8, %s6
  $region1: #{tpu_custom_call.1} parent=0
    #allocation2 [shape = 'u8[1024]{0}', space=vmem, size = 0x400, scoped, tag = 'output window, operand 0, single buffered']
    #allocation3 [shape = 's32[1]{0}', space=sflag, size = 0x4, scoped, tag = 'scoped memory for tpu_custom_call.1']
    %10 = vsyncpa [#allocation3], 0
    // Predicated region
    $region2: #{tpu_custom_call.1} parent=1 // pred_check
      _
    $region3: #{tpu_custom_call.1} parent=1 // pred_check_branch
      %12 = sbr.rel (0) target = $region5
    $region4: #{tpu_custom_call.1} parent=1 // pred_region
      _
    $region5: #{tpu_custom_call.1} parent=1 // pred_fallthru
      _
    // Predicated region
    $region6: #{tpu_custom_call.1} parent=1 // pred_check
      _
    $region7: #{tpu_custom_call.1} parent=1 // pred_check_branch
      %14 = sbr.rel (0) target = $region9
    $region8: #{tpu_custom_call.1} parent=1 // pred_region
      _
    $region9: #{tpu_custom_call.1} parent=1 // pred_fallthru
      _
    // Predicated region
    $region10: #{tpu_custom_call.1} parent=1 // pred_check
      _
    $region11: #{tpu_custom_call.1} parent=1 // pred_check_branch
      %16 = sbr.rel (0) target = $region13
    $region12: #{tpu_custom_call.1} parent=1 // pred_region
      _
    $region13: #{tpu_custom_call.1} parent=1 // pred_fallthru
      _
    // Predicated region
    $region14: #{tpu_custom_call.1} parent=1 // pred_check
      _
    $region15: #{tpu_custom_call.1} parent=1 // pred_check_branch
      %18 = sbr.rel (0) target = $region17
    $region16: #{tpu_custom_call.1} parent=1 // pred_region
      _
    $region17: #{tpu_custom_call.1} parent=1 // pred_fallthru
      _
    // Predicated region
    $region18: #{tpu_custom_call.1} parent=1 // pred_check
      _
    $region19: #{tpu_custom_call.1} parent=1 // pred_check_branch
      %20 = sbr.rel (0) target = $region21
    $region20: #{tpu_custom_call.1} parent=1 // pred_region
      _
    $region21: #{tpu_custom_call.1} parent=1 // pred_fallthru
      _
    %v22 = vld [vmem:[%s0] sm:$0xff]
    %v23 = vld [vmem:[%s0 + $0x8] sm:$0xff]
    %v24 = vld [vmem:[%s0 + $0x10] sm:$0xff]
    %v25 = vld [vmem:[%s0 + $0x18] sm:$0xff]
    %v26 = vld [vmem:[%s0 + $0x20] sm:$0xff]
    %v27 = vld [vmem:[%s0 + $0x28] sm:$0xff]
    %v28 = vld [vmem:[%s0 + $0x30] sm:$0xff]
    %v29 = vld [vmem:[%s0 + $0x38] sm:$0xff]
    %v30 = vld [vmem:[%s0 + $0x40] sm:$0xff]
    %v31 = vld [vmem:[%s0 + $0x48] sm:$0xff]
    %v32 = vld [vmem:[%s0 + $0x50] sm:$0xff]
    %v33 = vld [vmem:[%s0 + $0x58] sm:$0xff]
    %v34 = vld [vmem:[%s0 + $0x60] sm:$0xff]
    %v35 = vld [vmem:[%s0 + $0x68] sm:$0xff]
    %v36 = vld [vmem:[%s0 + $0x70] sm:$0xff]
    %v37 = vld [vmem:[%s0 + $0x78] sm:$0xff]
    %v38 = vunpack.c.l.bf16 %v22
    %v39 = vunpack.c.h.bf16 %v22
    %v40 = vunpack.c.l.bf16 %v23
    %v41 = vunpack.c.h.bf16 %v23
    %v42 = vunpack.c.l.bf16 %v24
    %v43 = vunpack.c.h.bf16 %v24
    %v44 = vunpack.c.l.bf16 %v25
    %v45 = vunpack.c.h.bf16 %v25
    %v46 = vunpack.c.l.bf16 %v26
    %v47 = vunpack.c.h.bf16 %v26
    %v48 = vunpack.c.l.bf16 %v27
    %v49 = vunpack.c.h.bf16 %v27
    %v50 = vunpack.c.l.bf16 %v28
    %v51 = vunpack.c.h.bf16 %v28
    %v52 = vunpack.c.l.bf16 %v29
    %v53 = vunpack.c.h.bf16 %v29
    %v54 = vunpack.c.l.bf16 %v30
    %v55 = vunpack.c.h.bf16 %v30
    %v56 = vunpack.c.l.bf16 %v31
    %v57 = vunpack.c.h.bf16 %v31
    %v58 = vunpack.c.l.bf16 %v32
    %v59 = vunpack.c.h.bf16 %v32
    %v60 = vunpack.c.l.bf16 %v33
    %v61 = vunpack.c.h.bf16 %v33
    %v62 = vunpack.c.l.bf16 %v34
    %v63 = vunpack.c.h.bf16 %v34
    %v64 = vunpack.c.l.bf16 %v35
    %v65 = vunpack.c.h.bf16 %v35
    %v66 = vunpack.c.l.bf16 %v36
    %v67 = vunpack.c.h.bf16 %v36
    %v68 = vunpack.c.l.bf16 %v37
    %v69 = vunpack.c.h.bf16 %v37
    %v70 = vld [vmem:[%s1] sm:$0xf]
    %v71 = vld [vmem:[%s1 + $0x4] sm:$0xf]
    %v72 = vld [vmem:[%s1 + $0x8] sm:$0xf]
    %v73 = vld [vmem:[%s1 + $0xc] sm:$0xf]
    %v74 = vld [vmem:[%s1 + $0x10] sm:$0xf]
    %v75 = vld [vmem:[%s1 + $0x14] sm:$0xf]
    %v76 = vld [vmem:[%s1 + $0x18] sm:$0xf]
    %v77 = vld [vmem:[%s1 + $0x1c] sm:$0xf]
    %v78 = vld [vmem:[%s1 + $0x20] sm:$0xf]
    %v79 = vld [vmem:[%s1 + $0x24] sm:$0xf]
    %v80 = vld [vmem:[%s1 + $0x28] sm:$0xf]
    %v81 = vld [vmem:[%s1 + $0x2c] sm:$0xf]
    %v82 = vld [vmem:[%s1 + $0x30] sm:$0xf]
    %v83 = vld [vmem:[%s1 + $0x34] sm:$0xf]
    %v84 = vld [vmem:[%s1 + $0x38] sm:$0xf]
    %v85 = vld [vmem:[%s1 + $0x3c] sm:$0xf]
    %v102 = vunpack.c.l.b16 %v70
    %v103 = vunpack.c.l.b16 %v71
    %v104 = vunpack.c.l.b16 %v72
    %v105 = vunpack.c.l.b16 %v73
    %v106 = vunpack.c.l.b16 %v74
    %v107 = vunpack.c.l.b16 %v75
    %v108 = vunpack.c.l.b16 %v76
    %v109 = vunpack.c.l.b16 %v77
    %v110 = vunpack.c.l.b16 %v78
    %v111 = vunpack.c.l.b16 %v79
    %v112 = vunpack.c.l.b16 %v80
    %v113 = vunpack.c.l.b16 %v81
    %v114 = vunpack.c.l.b16 %v82
    %v115 = vunpack.c.l.b16 %v83
    %v116 = vunpack.c.l.b16 %v84
    %v117 = vunpack.c.l.b16 %v85
    %v118 = vpack.c.b16 %v103, %v102
    %v119 = vpack.c.b16 %v105, %v104
    %v120 = vpack.c.b16 %v107, %v106
    %v121 = vpack.c.b16 %v109, %v108
    %v122 = vpack.c.b16 %v111, %v110
    %v123 = vpack.c.b16 %v113, %v112
    %v124 = vpack.c.b16 %v115, %v114
    %v125 = vpack.c.b16 %v117, %v116
    %v150 = vunpack.c.l.b16 %v22
    %v151 = vunpack.c.h.b16 %v22
    %v152 = vunpack.c.l.b16 %v23
    %v153 = vunpack.c.h.b16 %v23
    %v154 = vunpack.c.l.b16 %v24
    %v155 = vunpack.c.h.b16 %v24
    %v156 = vunpack.c.l.b16 %v25
    %v157 = vunpack.c.h.b16 %v25
    %v158 = vunpack.c.l.b16 %v26
    %v159 = vunpack.c.h.b16 %v26
    %v160 = vunpack.c.l.b16 %v27
    %v161 = vunpack.c.h.b16 %v27
    %v162 = vunpack.c.l.b16 %v28
    %v163 = vunpack.c.h.b16 %v28
    %v164 = vunpack.c.l.b16 %v29
    %v165 = vunpack.c.h.b16 %v29
    %v166 = vunpack.c.l.b16 %v30
    %v167 = vunpack.c.h.b16 %v30
    %v168 = vunpack.c.l.b16 %v31
    %v169 = vunpack.c.h.b16 %v31
    %v170 = vunpack.c.l.b16 %v32
    %v171 = vunpack.c.h.b16 %v32
    %v172 = vunpack.c.l.b16 %v33
    %v173 = vunpack.c.h.b16 %v33
    %v174 = vunpack.c.l.b16 %v34
    %v175 = vunpack.c.h.b16 %v34
    %v176 = vunpack.c.l.b16 %v35
    %v177 = vunpack.c.h.b16 %v35
    %v178 = vunpack.c.l.b16 %v36
    %v179 = vunpack.c.h.b16 %v36
    %v180 = vunpack.c.l.b16 %v37
    %v181 = vunpack.c.h.b16 %v37
    %v182 = vpack.c.b16 %v152, %v150
    %v183 = vpack.c.b16 %v153, %v151
    %v184 = vpack.c.b16 %v156, %v154
    %v185 = vpack.c.b16 %v157, %v155
    %v186 = vpack.c.b16 %v160, %v158
    %v187 = vpack.c.b16 %v161, %v159
    %v188 = vpack.c.b16 %v164, %v162
    %v189 = vpack.c.b16 %v165, %v163
    %v190 = vpack.c.b16 %v168, %v166
    %v191 = vpack.c.b16 %v169, %v167
    %v192 = vpack.c.b16 %v172, %v170
    %v193 = vpack.c.b16 %v173, %v171
    %v194 = vpack.c.b16 %v176, %v174
    %v195 = vpack.c.b16 %v177, %v175
    %v196 = vpack.c.b16 %v180, %v178
    %v197 = vpack.c.b16 %v181, %v179
    %214 = vmatprep.subr.bf16.mxu0 %v183
    %215 = vmatpush1.bf16.msra.mxu0 %v182
    %216 = vmatprep.subr.bf16.mxu0 %v185
    %217 = vmatpush1.bf16.msra.mxu0 %v184
    %218 = vmatprep.subr.bf16.mxu0 %v187
    %219 = vmatpush1.bf16.msra.mxu0 %v186
    %220 = vmatprep.subr.bf16.mxu0 %v189
    %221 = vmatpush1.bf16.msra.mxu0 %v188
    %222 = vmatprep.subr.bf16.mxu0 %v191
    %223 = vmatpush1.bf16.msra.mxu0 %v190
    %224 = vmatprep.subr.bf16.mxu0 %v193
    %225 = vmatpush1.bf16.msra.mxu0 %v192
    %226 = vmatprep.subr.bf16.mxu0 %v195
    %227 = vmatpush1.bf16.msra.mxu0 %v194
    %228 = vmatprep.subr.bf16.mxu0 %v197
    %229 = vmatpush1.bf16.msra.mxu0 %v196
    %230 = vmatprep.subr.bf16.mxu0 0
    %231 = vmatpush1.bf16.msra.mxu0 0
    %232 = vmatprep.subr.bf16.mxu0 0
    %233 = vmatpush1.bf16.msra.mxu0 0
    %234 = vmatprep.subr.bf16.mxu0 0
    %235 = vmatpush1.bf16.msra.mxu0 0
    %236 = vmatprep.subr.bf16.mxu0 0
    %237 = vmatpush1.bf16.msra.mxu0 0
    %238 = vmatprep.subr.bf16.mxu0 0
    %239 = vmatpush1.bf16.msra.mxu0 0
    %240 = vmatprep.subr.bf16.mxu0 0
    %241 = vmatpush1.bf16.msra.mxu0 0
    %242 = vmatprep.subr.bf16.mxu0 0
    %243 = vmatpush1.bf16.msra.mxu0 0
    %244 = vmatprep.subr.bf16.mxu0 0
    %245 = vmatpush1.bf16.msra.mxu0 0
    %246 = vmatprep.mubr.bf16.mxu0 0
    %247 = vmatmul.mubr.bf16.gmra.mrb[0].mxu0 %v118
    %v248 = vpop.f32.mrb[0].mxu0
    %v249 = vadd.f32 0.0, %v248
    %v250 = vpop.f32.mrb[0].mxu0
    %v251 = vadd.f32 0.0, %v250
    %v252 = vpop.f32.mrb[0].mxu0
    %v253 = vadd.f32 0.0, %v252
    %v254 = vpop.f32.mrb[0].mxu0
    %v255 = vadd.f32 0.0, %v254
    %256 = vmatprep.mubr.bf16.mxu0 0
    %257 = vmatmul.mubr.bf16.gmra.mrb[0].mxu0 %v119
    %v258 = vpop.f32.mrb[0].mxu0
    %v259 = vadd.f32 0.0, %v258
    %v260 = vpop.f32.mrb[0].mxu0
    %v261 = vadd.f32 0.0, %v260
    %v262 = vpop.f32.mrb[0].mxu0
    %v263 = vadd.f32 0.0, %v262
    %v264 = vpop.f32.mrb[0].mxu0
    %v265 = vadd.f32 0.0, %v264
    %266 = vmatprep.mubr.bf16.mxu0 0
    %267 = vmatmul.mubr.bf16.gmra.mrb[0].mxu0 %v120
    %v268 = vpop.f32.mrb[0].mxu0
    %v269 = vadd.f32 0.0, %v268
    %v270 = vpop.f32.mrb[0].mxu0
    %v271 = vadd.f32 0.0, %v270
    %v272 = vpop.f32.mrb[0].mxu0
    %v273 = vadd.f32 0.0, %v272
    %v274 = vpop.f32.mrb[0].mxu0
    %v275 = vadd.f32 0.0, %v274
    %276 = vmatprep.mubr.bf16.mxu0 0
    %277 = vmatmul.mubr.bf16.gmra.mrb[0].mxu0 %v121
    %v278 = vpop.f32.mrb[0].mxu0
    %v279 = vadd.f32 0.0, %v278
    %v280 = vpop.f32.mrb[0].mxu0
    %v281 = vadd.f32 0.0, %v280
    %v282 = vpop.f32.mrb[0].mxu0
    %v283 = vadd.f32 0.0, %v282
    %v284 = vpop.f32.mrb[0].mxu0
    %v285 = vadd.f32 0.0, %v284
    %286 = vmatprep.mubr.bf16.mxu0 0
    %287 = vmatmul.mubr.bf16.gmra.mrb[0].mxu0 %v122
    %v288 = vpop.f32.mrb[0].mxu0
    %v289 = vadd.f32 0.0, %v288
    %v290 = vpop.f32.mrb[0].mxu0
    %v291 = vadd.f32 0.0, %v290
    %v292 = vpop.f32.mrb[0].mxu0
    %v293 = vadd.f32 0.0, %v292
    %v294 = vpop.f32.mrb[0].mxu0
    %v295 = vadd.f32 0.0, %v294
    %296 = vmatprep.mubr.bf16.mxu0 0
    %297 = vmatmul.mubr.bf16.gmra.mrb[0].mxu0 %v123
    %v298 = vpop.f32.mrb[0].mxu0
    %v299 = vadd.f32 0.0, %v298
    %v300 = vpop.f32.mrb[0].mxu0
    %v301 = vadd.f32 0.0, %v300
    %v302 = vpop.f32.mrb[0].mxu0
    %v303 = vadd.f32 0.0, %v302
    %v304 = vpop.f32.mrb[0].mxu0
    %v305 = vadd.f32 0.0, %v304
    %306 = vmatprep.mubr.bf16.mxu0 0
    %307 = vmatmul.mubr.bf16.gmra.mrb[0].mxu0 %v124
    %v308 = vpop.f32.mrb[0].mxu0
    %v309 = vadd.f32 0.0, %v308
    %v310 = vpop.f32.mrb[0].mxu0
    %v311 = vadd.f32 0.0, %v310
    %v312 = vpop.f32.mrb[0].mxu0
    %v313 = vadd.f32 0.0, %v312
    %v314 = vpop.f32.mrb[0].mxu0
    %v315 = vadd.f32 0.0, %v314
    %316 = vmatprep.mubr.bf16.mxu0 0
    %317 = vmatmul.mubr.bf16.gmra.mrb[0].mxu0 %v125
    %v318 = vpop.f32.mrb[0].mxu0
    %v319 = vadd.f32 0.0, %v318
    %v320 = vpop.f32.mrb[0].mxu0
    %v321 = vadd.f32 0.0, %v320
    %v322 = vpop.f32.mrb[0].mxu0
    %v323 = vadd.f32 0.0, %v322
    %v324 = vpop.f32.mrb[0].mxu0
    %v325 = vadd.f32 0.0, %v324
    %326 = vdwg.mxu0
    %v327 = vmul.f32 %v249, %v249
    %v328 = vmul.f32 %v251, %v251
    %v329 = vmul.f32 %v253, %v253
    %v330 = vmul.f32 %v255, %v255
    %v331 = vmul.f32 %v259, %v259
    %v332 = vmul.f32 %v261, %v261
    %v333 = vmul.f32 %v263, %v263
    %v334 = vmul.f32 %v265, %v265
    %v335 = vmul.f32 %v269, %v269
    %v336 = vmul.f32 %v271, %v271
    %v337 = vmul.f32 %v273, %v273
    %v338 = vmul.f32 %v275, %v275
    %v339 = vmul.f32 %v279, %v279
    %v340 = vmul.f32 %v281, %v281
    %v341 = vmul.f32 %v283, %v283
    %v342 = vmul.f32 %v285, %v285
    %v343 = vmul.f32 %v289, %v289
    %v344 = vmul.f32 %v291, %v291
    %v345 = vmul.f32 %v293, %v293
    %v346 = vmul.f32 %v295, %v295
    %v347 = vmul.f32 %v299, %v299
    %v348 = vmul.f32 %v301, %v301
    %v349 = vmul.f32 %v303, %v303
    %v350 = vmul.f32 %v305, %v305
    %v351 = vmul.f32 %v309, %v309
    %v352 = vmul.f32 %v311, %v311
    %v353 = vmul.f32 %v313, %v313
    %v354 = vmul.f32 %v315, %v315
    %v355 = vmul.f32 %v319, %v319
    %v356 = vmul.f32 %v321, %v321
    %v357 = vmul.f32 %v323, %v323
    %v358 = vmul.f32 %v325, %v325
    %v359 = vld [vmem:[%s2] sm:$0xff]
    %v360 = vld [vmem:[%s2 + $0x8] sm:$0xff]
    %v361 = vld [vmem:[%s2 + $0x10] sm:$0xff]
    %v362 = vld [vmem:[%s2 + $0x18] sm:$0xff]
    %v363 = vld [vmem:[%s2 + $0x20] sm:$0xff]
    %v364 = vld [vmem:[%s2 + $0x28] sm:$0xff]
    %v365 = vld [vmem:[%s2 + $0x30] sm:$0xff]
    %v366 = vld [vmem:[%s2 + $0x38] sm:$0xff]
    %v367 = vld [vmem:[%s2 + $0x40] sm:$0xff]
    %v368 = vld [vmem:[%s2 + $0x48] sm:$0xff]
    %v369 = vld [vmem:[%s2 + $0x50] sm:$0xff]
    %v370 = vld [vmem:[%s2 + $0x58] sm:$0xff]
    %v371 = vld [vmem:[%s2 + $0x60] sm:$0xff]
    %v372 = vld [vmem:[%s2 + $0x68] sm:$0xff]
    %v373 = vld [vmem:[%s2 + $0x70] sm:$0xff]
    %v374 = vld [vmem:[%s2 + $0x78] sm:$0xff]
    %v375 = vld [vmem:[%s3] sm:$0xff]
    %v376 = vld [vmem:[%s3 + $0x8] sm:$0xff]
    %v377 = vld [vmem:[%s3 + $0x10] sm:$0xff]
    %v378 = vld [vmem:[%s3 + $0x18] sm:$0xff]
    %v379 = vld [vmem:[%s3 + $0x20] sm:$0xff]
    %v380 = vld [vmem:[%s3 + $0x28] sm:$0xff]
    %v381 = vld [vmem:[%s3 + $0x30] sm:$0xff]
    %v382 = vld [vmem:[%s3 + $0x38] sm:$0xff]
    %v383 = vld [vmem:[%s3 + $0x40] sm:$0xff]
    %v384 = vld [vmem:[%s3 + $0x48] sm:$0xff]
    %v385 = vld [vmem:[%s3 + $0x50] sm:$0xff]
    %v386 = vld [vmem:[%s3 + $0x58] sm:$0xff]
    %v387 = vld [vmem:[%s3 + $0x60] sm:$0xff]
    %v388 = vld [vmem:[%s3 + $0x68] sm:$0xff]
    %v389 = vld [vmem:[%s3 + $0x70] sm:$0xff]
    %v390 = vld [vmem:[%s3 + $0x78] sm:$0xff]
    %392 = vset.pattern.permute.xlu0 0
    %393 = vperm.xlu0 %392, %v375
    %v394 = vpop.permute.xlu0 %393
    %397 = vset.pattern.permute.xlu0 0
    %398 = vperm.xlu0 %397, %v376
    %v399 = vpop.permute.xlu0 %398
    %402 = vset.pattern.permute.xlu0 0
    %403 = vperm.xlu0 %402, %v377
    %v404 = vpop.permute.xlu0 %403
    %407 = vset.pattern.permute.xlu0 0
    %408 = vperm.xlu0 %407, %v378
    %v409 = vpop.permute.xlu0 %408
    %412 = vset.pattern.permute.xlu0 0
    %413 = vperm.xlu0 %412, %v379
    %v414 = vpop.permute.xlu0 %413
    %417 = vset.pattern.permute.xlu0 0
    %418 = vperm.xlu0 %417, %v380
    %v419 = vpop.permute.xlu0 %418
    %422 = vset.pattern.permute.xlu0 0
    %423 = vperm.xlu0 %422, %v381
    %v424 = vpop.permute.xlu0 %423
    %427 = vset.pattern.permute.xlu0 0
    %428 = vperm.xlu0 %427, %v382
    %v429 = vpop.permute.xlu0 %428
    %432 = vset.pattern.permute.xlu0 0
    %433 = vperm.xlu0 %432, %v383
    %v434 = vpop.permute.xlu0 %433
    %437 = vset.pattern.permute.xlu0 0
    %438 = vperm.xlu0 %437, %v384
    %v439 = vpop.permute.xlu0 %438
    %442 = vset.pattern.permute.xlu0 0
    %443 = vperm.xlu0 %442, %v385
    %v444 = vpop.permute.xlu0 %443
    %447 = vset.pattern.permute.xlu0 0
    %448 = vperm.xlu0 %447, %v386
    %v449 = vpop.permute.xlu0 %448
    %452 = vset.pattern.permute.xlu0 0
    %453 = vperm.xlu0 %452, %v387
    %v454 = vpop.permute.xlu0 %453
    %457 = vset.pattern.permute.xlu0 0
    %458 = vperm.xlu0 %457, %v388
    %v459 = vpop.permute.xlu0 %458
    %462 = vset.pattern.permute.xlu0 0
    %463 = vperm.xlu0 %462, %v389
    %v464 = vpop.permute.xlu0 %463
    %467 = vset.pattern.permute.xlu0 0
    %468 = vperm.xlu0 %467, %v390
    %v469 = vpop.permute.xlu0 %468
    %v471 = vmul.f32 %v38, %v394
    %v472 = vmul.f32 %v39, %v394
    %v473 = vmul.f32 %v40, %v399
    %v474 = vmul.f32 %v41, %v399
    %v475 = vmul.f32 %v42, %v404
    %v476 = vmul.f32 %v43, %v404
    %v477 = vmul.f32 %v44, %v409
    %v478 = vmul.f32 %v45, %v409
    %v479 = vmul.f32 %v46, %v414
    %v480 = vmul.f32 %v47, %v414
    %v481 = vmul.f32 %v48, %v419
    %v482 = vmul.f32 %v49, %v419
    %v483 = vmul.f32 %v50, %v424
    %v484 = vmul.f32 %v51, %v424
    %v485 = vmul.f32 %v52, %v429
    %v486 = vmul.f32 %v53, %v429
    %v487 = vmul.f32 %v54, %v434
    %v488 = vmul.f32 %v55, %v434
    %v489 = vmul.f32 %v56, %v439
    %v490 = vmul.f32 %v57, %v439
    %v491 = vmul.f32 %v58, %v444
    %v492 = vmul.f32 %v59, %v444
    %v493 = vmul.f32 %v60, %v449
    %v494 = vmul.f32 %v61, %v449
    %v495 = vmul.f32 %v62, %v454
    %v496 = vmul.f32 %v63, %v454
    %v497 = vmul.f32 %v64, %v459
    %v498 = vmul.f32 %v65, %v459
    %v499 = vmul.f32 %v66, %v464
    %v500 = vmul.f32 %v67, %v464
    %v501 = vmul.f32 %v68, %v469
    %v502 = vmul.f32 %v69, %v469
    %504 = vset.pattern.permute.xlu0 0
    %505 = vperm.xlu0 %504, %v359
    %v506 = vpop.permute.xlu0 %505
    %509 = vset.pattern.permute.xlu0 0
    %510 = vperm.xlu0 %509, %v360
    %v511 = vpop.permute.xlu0 %510
    %514 = vset.pattern.permute.xlu0 0
    %515 = vperm.xlu0 %514, %v361
    %v516 = vpop.permute.xlu0 %515
    %519 = vset.pattern.permute.xlu0 0
    %520 = vperm.xlu0 %519, %v362
    %v521 = vpop.permute.xlu0 %520
    %524 = vset.pattern.permute.xlu0 0
    %525 = vperm.xlu0 %524, %v363
    %v526 = vpop.permute.xlu0 %525
    %529 = vset.pattern.permute.xlu0 0
    %530 = vperm.xlu0 %529, %v364
    %v531 = vpop.permute.xlu0 %530
    %534 = vset.pattern.permute.xlu0 0
    %535 = vperm.xlu0 %534, %v365
    %v536 = vpop.permute.xlu0 %535
    %539 = vset.pattern.permute.xlu0 0
    %540 = vperm.xlu0 %539, %v366
    %v541 = vpop.permute.xlu0 %540
    %544 = vset.pattern.permute.xlu0 0
    %545 = vperm.xlu0 %544, %v367
    %v546 = vpop.permute.xlu0 %545
    %549 = vset.pattern.permute.xlu0 0
    %550 = vperm.xlu0 %549, %v368
    %v551 = vpop.permute.xlu0 %550
    %554 = vset.pattern.permute.xlu0 0
    %555 = vperm.xlu0 %554, %v369
    %v556 = vpop.permute.xlu0 %555
    %559 = vset.pattern.permute.xlu0 0
    %560 = vperm.xlu0 %559, %v370
    %v561 = vpop.permute.xlu0 %560
    %564 = vset.pattern.permute.xlu0 0
    %565 = vperm.xlu0 %564, %v371
    %v566 = vpop.permute.xlu0 %565
    %569 = vset.pattern.permute.xlu0 0
    %570 = vperm.xlu0 %569, %v372
    %v571 = vpop.permute.xlu0 %570
    %574 = vset.pattern.permute.xlu0 0
    %575 = vperm.xlu0 %574, %v373
    %v576 = vpop.permute.xlu0 %575
    %579 = vset.pattern.permute.xlu0 0
    %580 = vperm.xlu0 %579, %v374
    %v581 = vpop.permute.xlu0 %580
    %v583 = vsub.f32 %v506, %v471
    %v584 = vsub.f32 %v506, %v472
    %v585 = vsub.f32 %v511, %v473
    %v586 = vsub.f32 %v511, %v474
    %v587 = vsub.f32 %v516, %v475
    %v588 = vsub.f32 %v516, %v476
    %v589 = vsub.f32 %v521, %v477
    %v590 = vsub.f32 %v521, %v478
    %v591 = vsub.f32 %v526, %v479
    %v592 = vsub.f32 %v526, %v480
    %v593 = vsub.f32 %v531, %v481
    %v594 = vsub.f32 %v531, %v482
    %v595 = vsub.f32 %v536, %v483
    %v596 = vsub.f32 %v536, %v484
    %v597 = vsub.f32 %v541, %v485
    %v598 = vsub.f32 %v541, %v486
    %v599 = vsub.f32 %v546, %v487
    %v600 = vsub.f32 %v546, %v488
    %v601 = vsub.f32 %v551, %v489
    %v602 = vsub.f32 %v551, %v490
    %v603 = vsub.f32 %v556, %v491
    %v604 = vsub.f32 %v556, %v492
    %v605 = vsub.f32 %v561, %v493
    %v606 = vsub.f32 %v561, %v494
    %v607 = vsub.f32 %v566, %v495
    %v608 = vsub.f32 %v566, %v496
    %v609 = vsub.f32 %v571, %v497
    %v610 = vsub.f32 %v571, %v498
    %v611 = vsub.f32 %v576, %v499
    %v612 = vsub.f32 %v576, %v500
    %v613 = vsub.f32 %v581, %v501
    %v614 = vsub.f32 %v581, %v502
    %v615 = vmul.f32 %v38, %v583
    %v616 = vmul.f32 %v39, %v584
    %v617 = vmul.f32 %v40, %v585
    %v618 = vmul.f32 %v41, %v586
    %v619 = vmul.f32 %v42, %v587
    %v620 = vmul.f32 %v43, %v588
    %v621 = vmul.f32 %v44, %v589
    %v622 = vmul.f32 %v45, %v590
    %v623 = vmul.f32 %v46, %v591
    %v624 = vmul.f32 %v47, %v592
    %v625 = vmul.f32 %v48, %v593
    %v626 = vmul.f32 %v49, %v594
    %v627 = vmul.f32 %v50, %v595
    %v628 = vmul.f32 %v51, %v596
    %v629 = vmul.f32 %v52, %v597
    %v630 = vmul.f32 %v53, %v598
    %v631 = vmul.f32 %v54, %v599
    %v632 = vmul.f32 %v55, %v600
    %v633 = vmul.f32 %v56, %v601
    %v634 = vmul.f32 %v57, %v602
    %v635 = vmul.f32 %v58, %v603
    %v636 = vmul.f32 %v59, %v604
    %v637 = vmul.f32 %v60, %v605
    %v638 = vmul.f32 %v61, %v606
    %v639 = vmul.f32 %v62, %v607
    %v640 = vmul.f32 %v63, %v608
    %v641 = vmul.f32 %v64, %v609
    %v642 = vmul.f32 %v65, %v610
    %v643 = vmul.f32 %v66, %v611
    %v644 = vmul.f32 %v67, %v612
    %v645 = vmul.f32 %v68, %v613
    %v646 = vmul.f32 %v69, %v614
    %v647 = vadd.f32 %v327, %v615
    %v648 = vadd.f32 %v328, %v616
    %v649 = vadd.f32 %v329, %v617
    %v650 = vadd.f32 %v330, %v618
    %v651 = vadd.f32 %v331, %v619
    %v652 = vadd.f32 %v332, %v620
    %v653 = vadd.f32 %v333, %v621
    %v654 = vadd.f32 %v334, %v622
    %v655 = vadd.f32 %v335, %v623
    %v656 = vadd.f32 %v336, %v624
    %v657 = vadd.f32 %v337, %v625
    %v658 = vadd.f32 %v338, %v626
    %v659 = vadd.f32 %v339, %v627
    %v660 = vadd.f32 %v340, %v628
    %v661 = vadd.f32 %v341, %v629
    %v662 = vadd.f32 %v342, %v630
    %v663 = vadd.f32 %v343, %v631
    %v664 = vadd.f32 %v344, %v632
    %v665 = vadd.f32 %v345, %v633
    %v666 = vadd.f32 %v346, %v634
    %v667 = vadd.f32 %v347, %v635
    %v668 = vadd.f32 %v348, %v636
    %v669 = vadd.f32 %v349, %v637
    %v670 = vadd.f32 %v350, %v638
    %v671 = vadd.f32 %v351, %v639
    %v672 = vadd.f32 %v352, %v640
    %v673 = vadd.f32 %v353, %v641
    %v674 = vadd.f32 %v354, %v642
    %v675 = vadd.f32 %v355, %v643
    %v676 = vadd.f32 %v356, %v644
    %v677 = vadd.f32 %v357, %v645
    %v678 = vadd.f32 %v358, %v646
    %v679 = vadd.f32 %v647, %v649
    %v680 = vadd.f32 %v679, %v651
    %v681 = vadd.f32 %v680, %v653
    %v682 = vadd.f32 %v681, %v655
    %v683 = vadd.f32 %v682, %v657
    %v684 = vadd.f32 %v683, %v659
    %v685 = vadd.f32 %v684, %v661
    %v686 = vadd.f32 %v685, %v663
    %v687 = vadd.f32 %v686, %v665
    %v688 = vadd.f32 %v687, %v667
    %v689 = vadd.f32 %v688, %v669
    %v690 = vadd.f32 %v689, %v671
    %v691 = vadd.f32 %v690, %v673
    %v692 = vadd.f32 %v691, %v675
    %v693 = vadd.f32 %v692, %v677
    %v694 = vrot.slane %v693, 4
    %v695 = vadd.f32 %v693, %v694
    %v696 = vrot.slane %v695, 2
    %v697 = vadd.f32 %v695, %v696
    %v698 = vrot.slane %v697, 1
    %v699 = vadd.f32 %v697, %v698
    %v700 = vadd.f32 %v648, %v650
    %v701 = vadd.f32 %v700, %v652
    %v702 = vadd.f32 %v701, %v654
    %v703 = vadd.f32 %v702, %v656
    %v704 = vadd.f32 %v703, %v658
    %v705 = vadd.f32 %v704, %v660
    %v706 = vadd.f32 %v705, %v662
    %v707 = vadd.f32 %v706, %v664
    %v708 = vadd.f32 %v707, %v666
    %v709 = vadd.f32 %v708, %v668
    %v710 = vadd.f32 %v709, %v670
    %v711 = vadd.f32 %v710, %v672
    %v712 = vadd.f32 %v711, %v674
    %v713 = vadd.f32 %v712, %v676
    %v714 = vadd.f32 %v713, %v678
    %v715 = vrot.slane %v714, 4
    %v716 = vadd.f32 %v714, %v715
    %v717 = vrot.slane %v716, 2
    %v718 = vadd.f32 %v716, %v717
    %v719 = vrot.slane %v718, 1
    %v720 = vadd.f32 %v718, %v719
    %v721 = vld [vmem:[%s4] sm:$0x3]
    %v723 = vlaneseq
    %v724 = vshrl.u32 %v723, 7
    %v725 = vsub.s32 0, %v724
    %v726 = vrot.slane %v721, %v725
    %v727 = vlaneseq
    %v728 = vshrl.u32 %v727, 7
    %v729 = vsub.s32 1, %v728
    %v730 = vrot.slane %v721, %v729
    %v733 = vadd.f32 %v699, %v726
    %v734 = vadd.f32 %v720, %v730
    %v737 = vcombine.low %v733, %v734
    %v739 = vunpack.c.l.s4 1966171168
    %v740 = vunpack.c.0.s8 %v739
    %v741 = vlaneseq
    %v742 = vshrl.u32 %v741, 7
    %v743 = vsub.s32 %v740, %v742
    %v744 = vrot.slane %v737, %v743
    %v746 = vunpack.c.l.s4 1966171168
    %v747 = vunpack.c.0.s8 %v746
    %v748 = vlaneseq
    %v749 = vshrl.u32 %v748, 7
    %v750 = vsub.s32 %v747, %v749
    %v751 = vrot.slane %v744, %v750
    %v753 = vlaneseq
    %vm754 = vcmp.ge.s32.totalorder %v753, 0
    %vm755 = vcmp.lt.s32.totalorder %v753, 256
    %vm756 = vmand %vm754, %vm755
    %757 = vst.msk [vmem:[#allocation2] sm:$0x3] %vm756, %v751
    // Predicated region
    $region22: #{tpu_custom_call.1} parent=1 // pred_check
      _
    $region23: #{tpu_custom_call.1} parent=1 // pred_check_branch
      %759 = sbr.rel (0) target = $region25
    $region24: #{tpu_custom_call.1} parent=1 // pred_region
      %s761 = ssub.s32 32, 32
      %762 = vsyncadd [#allocation3], %s761
      %s764 = sshll.u32 [#allocation2], 4
      %s765 = int_to_ptr.vmem [resolvable:$true] %s764
      %767 = dma.vmem_to_hbm [thread:$0]  %s765, 32, %s5, [#allocation3]
    $region25: #{tpu_custom_call.1} parent=1 // pred_fallthru
      _
    // Predicated region
    $region26: #{tpu_custom_call.1} parent=1 // pred_check
      _
    $region27: #{tpu_custom_call.1} parent=1 // pred_check_branch
      %769 = sbr.rel (0) target = $region29
    $region28: #{tpu_custom_call.1} parent=1 // pred_region
      %770 = dma.done [#allocation3], 32
    $region29: #{tpu_custom_call.1} parent=1 // pred_fallthru
      _
    %771 = vsyncpa [#allocation3], 1

</llo_original>
